<compile_context>
chip_gen: v5e
topology: v5e:2x2
jax: 0.10.0
libtpu: 0.0.40
codegen_flags: <defaults>
</compile_context>

<pallas_src>
import functools

import jax
import jax.numpy as jnp
from jax import lax
from jax.experimental import pallas as pl
from jax.experimental.pallas import tpu as pltpu


def _kd_loss_kernel(x_ref, t_ref, kl_ref, *, inv_temp, n_rows, tile_n):
    # One (TILE_N, C) block per grid step; class/softmax axis is the lane axis.
    x = x_ref[...].astype(jnp.float32) * inv_temp
    y = t_ref[...].astype(jnp.float32) * inv_temp

    # log-sum-exp of input / T (log_softmax denominator).
    x_max = jnp.max(x, axis=-1, keepdims=True)
    x_sh = x - x_max
    lse_x = jnp.log(jnp.sum(jnp.exp(x_sh), axis=-1, keepdims=True))

    # softmax stats of target / T.
    y_max = jnp.max(y, axis=-1, keepdims=True)
    y_sh = y - y_max
    ey = jnp.exp(y_sh)
    sy = jnp.sum(ey, axis=-1, keepdims=True)
    # sum_c ey * (y_sh - x_sh): the only per-element cross term needed.
    w = jnp.sum(ey * (y_sh - x_sh), axis=-1, keepdims=True)

    # Folded per-row KL:
    #   sum_c q*(log q - log p) = w / sy - log(sy) + lse_x
    # Exact per-row divide (only TILE_N of them) keeps the 1e-5 rtol check.
    kl = w / sy - jnp.log(sy) + lse_x

    # Ragged last tile: select (not multiply) away out-of-bounds rows so
    # garbage/NaN in unread VMEM rows can never reach the final sum.
    row = pl.program_id(0) * tile_n + lax.broadcasted_iota(jnp.int32, kl.shape, 0)
    kl_ref[...] = jnp.where(row < n_rows, kl, 0.0)


def _vmem_capacity_bytes():
    """Physical VMEM of this generation; conservative default if unavailable."""
    try:
        cap = int(pltpu.get_tpu_info().vmem_capacity_bytes)
        if cap > 0:
            return cap
    except Exception:
        pass
    return 64 * 1024 * 1024  # v7x per-TensorCore VMEM (smallest current gen)


def _pick_tile_n(n, c, itemsize, vmem_cap):
    """Rows per grid step, sized from the actual VMEM capacity."""
    # ~37.5% of physical VMEM for block sizing (headroom for compiler scratch).
    budget = (vmem_cap * 3) // 8
    # Live bytes per block row:
    #   2 inputs x 2 pipeline buffers in the native dtype
    #   + ~7 full-tile f32 temporaries (x, y, x_sh, y_sh, exp(x_sh), ey, ey*dy).
    per_row = c * (4 * itemsize + 7 * 4)
    vmem_rows = max(8, budget // per_row)

    # Sublane packing: f32 -> 8, bf16/fp16 -> 16, 8-bit -> 32.
    align = max(8, 32 // itemsize)

    # Aim for >= 4 MiB per input block (amortizes the ~0.35 us per-step cost),
    # bounded by what fits in the VMEM budget.
    target_rows = -(-(4 * 1024 * 1024) // (c * itemsize))
    tile = min(vmem_rows, max(target_rows, align))

    # Never exceed the (alignment-rounded) batch; keep >= 4 grid steps when the
    # batch is large enough (v7x megacore sharding + pipeline depth).
    n_al = -(-n // align) * align
    tile = min(tile, n_al)
    if n_al >= 4 * align:
        tile = min(tile, max(align, (n_al // 4 // align) * align))

    return max(align, (tile // align) * align)


def kd_loss(inp, tgt, temp_factor):
    """inp, tgt: (N, C) logits (any float dtype). Returns scalar f32 loss."""
    assert inp.shape == tgt.shape and inp.ndim == 2
    n, c = inp.shape
    itemsize = jnp.dtype(inp.dtype).itemsize

    vmem_cap = _vmem_capacity_bytes()
    tile_n = _pick_tile_n(n, c, itemsize, vmem_cap)
    num_tiles = -(-n // tile_n)
    # ~70% of physical VMEM as the scoped limit (≈45 MiB v7x, ≈90 MiB v5e/v6e).
    vmem_limit = int(vmem_cap * 0.70)

    kernel = functools.partial(
        _kd_loss_kernel,
        inv_temp=1.0 / float(temp_factor),
        n_rows=n,
        tile_n=tile_n,
    )

    kl_rows = pl.pallas_call(
        kernel,
        out_shape=jax.ShapeDtypeStruct((n, 1), jnp.float32),
        grid=(num_tiles,),
        in_specs=[
            pl.BlockSpec((tile_n, c), lambda i: (i, 0)),
            pl.BlockSpec((tile_n, c), lambda i: (i, 0)),
        ],
        out_specs=pl.BlockSpec((tile_n, 1), lambda i: (i, 0)),
        compiler_params=pltpu.CompilerParams(
            dimension_semantics=("parallel",),
            vmem_limit_bytes=vmem_limit,
        ),
    )(inp, tgt)

    # KLDivLoss(reduction='sum') * T^2 / N.
    scale = float(temp_factor) ** 2 / n
    return jnp.sum(kl_rows) * scale


def _kd_loss_ref(inp, tgt, temp_factor):
    log_p = jax.nn.log_softmax(inp / temp_factor, axis=1)
    q = jax.nn.softmax(tgt / temp_factor, axis=1)
    kl = jnp.sum(q * (jnp.log(q) - log_p))
    return kl * temp_factor**2 / inp.shape[0]


if __name__ == "__main__":
    key = jax.random.PRNGKey(0)
    k1, k2, k3, k4 = jax.random.split(key, 4)
    temp_factor = 4.0

    # Small, module-consistent shape: batch of 8 examples, 128 classes.
    N, C = 8, 128
    inp = jax.random.normal(k1, (N, C), dtype=jnp.float32)
    tgt = jax.random.normal(k2, (N, C), dtype=jnp.float32)
    loss = kd_loss(inp, tgt, temp_factor)
    jax.block_until_ready(loss)
    ref = _kd_loss_ref(inp, tgt, temp_factor)
    assert jnp.allclose(loss, ref, rtol=1e-5, atol=1e-6), (loss, ref)

    # Ragged batch + non-multiple-of-128 class count: exercises the in-kernel
    # row mask (no HBM padding copies) and the full-extent class block.
    N2, C2 = 10, 96
    inp2 = jax.random.normal(k3, (N2, C2), dtype=jnp.float32)
    tgt2 = jax.random.normal(k4, (N2, C2), dtype=jnp.float32)
    loss2 = kd_loss(inp2, tgt2, temp_factor)
    jax.block_until_ready(loss2)
    ref2 = _kd_loss_ref(inp2, tgt2, temp_factor)
    assert jnp.allclose(loss2, ref2, rtol=1e-5, atol=1e-6), (loss2, ref2)

    # bf16 logits path: half the HBM traffic, 16-aligned tiles, f32 math inside.
    inp_bf = inp.astype(jnp.bfloat16)
    tgt_bf = tgt.astype(jnp.bfloat16)
    loss_bf = kd_loss(inp_bf, tgt_bf, temp_factor)
    jax.block_until_ready(loss_bf)
    ref_bf = _kd_loss_ref(
        inp_bf.astype(jnp.float32), tgt_bf.astype(jnp.float32), temp_factor
    )
    assert jnp.allclose(loss_bf, ref_bf, rtol=1e-4, atol=1e-5), (loss_bf, ref_bf)

    print("KERNEL_OK")
</pallas_src>

<mosaic_0001>
module attributes {stable_mosaic.version = 11 : i64} {
  func.func @_kd_loss_kernel(%arg0: i32, %arg1: memref<8x128xf32, #tpu.memory_space<vmem>>, %arg2: memref<8x128xf32, #tpu.memory_space<vmem>>, %arg3: memref<8x1xf32, #tpu.memory_space<vmem>>) attributes {dimension_semantics = [#tpu.dimension_semantics<parallel>], iteration_bounds = array<i64: 1>, scalar_prefetch = 0 : i64, scratch_operands = 0 : i64, tpu.core_type = #tpu.core_type<tc>, window_params = [{transform_indices = @transform_0, window_bounds = array<i64: 8, 128>}, {transform_indices = @transform_1, window_bounds = array<i64: 8, 128>}, {transform_indices = @transform_2, window_bounds = array<i64: 8, 1>}]} {
    %c0 = arith.constant 0 : index
    %c0_0 = arith.constant 0 : index
    %0 = vector.load %arg1[%c0, %c0_0] : memref<8x128xf32, #tpu.memory_space<vmem>>, vector<8x128xf32>
    %cst = arith.constant 2.500000e-01 : f32
    %1 = vector.broadcast %cst : f32 to vector<8x128xf32>
    %2 = arith.mulf %0, %1 : vector<8x128xf32>
    %c0_1 = arith.constant 0 : index
    %c0_2 = arith.constant 0 : index
    %3 = vector.load %arg2[%c0_1, %c0_2] : memref<8x128xf32, #tpu.memory_space<vmem>>, vector<8x128xf32>
    %cst_3 = arith.constant 2.500000e-01 : f32
    %4 = vector.broadcast %cst_3 : f32 to vector<8x128xf32>
    %5 = arith.mulf %3, %4 : vector<8x128xf32>
    %cst_4 = arith.constant dense<0xFF800000> : vector<8xf32>
    %6 = vector.multi_reduction <maximumf>, %2, %cst_4 [1] : vector<8x128xf32> to vector<8xf32>
    %7 = vector.shape_cast %6 : vector<8xf32> to vector<8x1xf32>
    %8 = vector.broadcast %7 : vector<8x1xf32> to vector<8x128xf32>
    %9 = arith.subf %2, %8 : vector<8x128xf32>
    %10 = math.exp %9 : vector<8x128xf32>
    %cst_5 = arith.constant dense<0.000000e+00> : vector<8xf32>
    %11 = vector.multi_reduction <add>, %10, %cst_5 [1] : vector<8x128xf32> to vector<8xf32>
    %12 = vector.shape_cast %11 : vector<8xf32> to vector<8x1xf32>
    %13 = math.log %12 : vector<8x1xf32>
    %cst_6 = arith.constant dense<0xFF800000> : vector<8xf32>
    %14 = vector.multi_reduction <maximumf>, %5, %cst_6 [1] : vector<8x128xf32> to vector<8xf32>
    %15 = vector.shape_cast %14 : vector<8xf32> to vector<8x1xf32>
    %16 = vector.broadcast %15 : vector<8x1xf32> to vector<8x128xf32>
    %17 = arith.subf %5, %16 : vector<8x128xf32>
    %18 = math.exp %17 : vector<8x128xf32>
    %cst_7 = arith.constant dense<0.000000e+00> : vector<8xf32>
    %19 = vector.multi_reduction <add>, %18, %cst_7 [1] : vector<8x128xf32> to vector<8xf32>
    %20 = vector.shape_cast %19 : vector<8xf32> to vector<8x1xf32>
    %21 = arith.subf %17, %9 : vector<8x128xf32>
    %22 = arith.mulf %18, %21 : vector<8x128xf32>
    %cst_8 = arith.constant dense<0.000000e+00> : vector<8xf32>
    %23 = vector.multi_reduction <add>, %22, %cst_8 [1] : vector<8x128xf32> to vector<8xf32>
    %24 = vector.shape_cast %23 : vector<8xf32> to vector<8x1xf32>
    %25 = arith.divf %24, %20 : vector<8x1xf32>
    %26 = math.log %20 : vector<8x1xf32>
    %27 = arith.subf %25, %26 : vector<8x1xf32>
    %28 = arith.addf %27, %13 : vector<8x1xf32>
    %c8_i32 = arith.constant 8 : i32
    %29 = arith.muli %arg0, %c8_i32 : i32
    %30 = tpu.iota {dimensions = array<i32: 0>} : vector<8x1xi32>
    %31 = vector.broadcast %29 : i32 to vector<8x1xi32>
    %32 = arith.addi %31, %30 : vector<8x1xi32>
    %c8_i32_9 = arith.constant 8 : i32
    %33 = vector.broadcast %c8_i32_9 : i32 to vector<8x1xi32>
    %34 = arith.cmpi slt, %32, %33 : vector<8x1xi32>
    %cst_10 = arith.constant 0.000000e+00 : f32
    %35 = vector.broadcast %cst_10 : f32 to vector<8x1xf32>
    %36 = arith.select %34, %28, %35 : vector<8x1xi1>, vector<8x1xf32>
    %c0_11 = arith.constant 0 : index
    %c0_12 = arith.constant 0 : index
    %37 = vector.load %arg3[%c0_11, %c0_12] : memref<8x1xf32, #tpu.memory_space<vmem>>, vector<8x1xf32>
    tpu.vector_store %arg3[%c0_11, %c0_12], %36 {strides = array<i32>} : memref<8x1xf32, #tpu.memory_space<vmem>>, vector<8x1xf32>,
    return
  }
  func.func @transform_0(%arg0: i32) -> (i32, i32) {
    %c0_i32 = arith.constant 0 : i32
    %c0_i32_0 = arith.constant 0 : i32
    return %arg0, %c0_i32 : i32, i32
  }
  func.func @transform_1(%arg0: i32) -> (i32, i32) {
    %c0_i32 = arith.constant 0 : i32
    %c0_i32_0 = arith.constant 0 : i32
    return %arg0, %c0_i32 : i32, i32
  }
  func.func @transform_2(%arg0: i32) -> (i32, i32) {
    %c0_i32 = arith.constant 0 : i32
    %c0_i32_0 = arith.constant 0 : i32
    return %arg0, %c0_i32 : i32, i32
  }
}

</mosaic_0001>

<llo_original>
// kernel: tpu_custom_call.1
$region0: #{tpu_custom_call.1}
  #allocation0 [shape = 'u32[]', space=smem, size = 0x4, offset = 0x4, fixed_abs, tag = 'smem constant byte address 0x4 - core index']
  #allocation1 [shape = 'u32[72,128]{1,0:T(1,128)}', space=vmem, size = 0x9000, scoped, tag = 'internal scratch']
  %s0 = inlined_call_operand.hbm [shape: f32[8,128], index: 0, kind: input, shape index: {}]
  %s1 = inlined_call_operand.hbm [shape: f32[8,128], index: 1, kind: input, shape index: {}]
  %s2 = inlined_call_operand.vmem [shape: f32[8,1], index: 2, kind: output, shape index: {}]
  %s3 = sld [smem:[#allocation0]]
  $region26: #{tpu_custom_call.1} parent=0
    _
  %s5 = ssub.s32 1, %s3
  %s6 = scalar_select 0, %s5, %s3
  $region1: #{tpu_custom_call.1} parent=0
    #allocation2 [shape = 'u8[4096]{0}', space=vmem, size = 0x1000, scoped, tag = 'input window, operand 0, single buffered']
    #allocation3 [shape = 's32[1]{0}', space=sflag, size = 0x4, scoped, tag = 'scoped memory for tpu_custom_call.1']
    #allocation4 [shape = 'u8[4096]{0}', space=vmem, size = 0x1000, scoped, tag = 'input window, operand 1, single buffered']
    #allocation5 [shape = 's32[1]{0}', space=sflag, size = 0x4, scoped, tag = 'scoped memory for tpu_custom_call.1']
    %7 = vsyncpa [#allocation3], 0
    %8 = vsyncpa [#allocation5], 0
    // Predicated region
    $region2: #{tpu_custom_call.1} parent=1 // pred_check
      _
    $region3: #{tpu_custom_call.1} parent=1 // pred_check_branch
      %10 = sbr.rel (0) target = $region5
    $region4: #{tpu_custom_call.1} parent=1 // pred_region
      %12 = vsyncadd [#allocation3], 0
      %s14 = sshll.u32 %s0, 4
      %s15 = int_to_ptr.hbm [resolvable:$true] %s14
      %s16 = sshll.u32 [#allocation2], 4
      %s17 = int_to_ptr.vmem [resolvable:$true] %s16
      %19 = dma.hbm_to_vmem [thread:$0]  %s15, 128, %s17, [#allocation3]
    $region5: #{tpu_custom_call.1} parent=1 // pred_fallthru
      _
    // Predicated region
    $region6: #{tpu_custom_call.1} parent=1 // pred_check
      _
    $region7: #{tpu_custom_call.1} parent=1 // pred_check_branch
      %21 = sbr.rel (0) target = $region9
    $region8: #{tpu_custom_call.1} parent=1 // pred_region
      %23 = vsyncadd [#allocation5], 0
      %s25 = sshll.u32 %s1, 4
      %s26 = int_to_ptr.hbm [resolvable:$true] %s25
      %s27 = sshll.u32 [#allocation4], 4
      %s28 = int_to_ptr.vmem [resolvable:$true] %s27
      %30 = dma.hbm_to_vmem [thread:$0]  %s26, 128, %s28, [#allocation5]
    $region9: #{tpu_custom_call.1} parent=1 // pred_fallthru
      _
    // Predicated region
    $region10: #{tpu_custom_call.1} parent=1 // pred_check
      _
    $region11: #{tpu_custom_call.1} parent=1 // pred_check_branch
      %32 = sbr.rel (0) target = $region13
    $region12: #{tpu_custom_call.1} parent=1 // pred_region
      %34 = dma.done [#allocation3], 128
    $region13: #{tpu_custom_call.1} parent=1 // pred_fallthru
      _
    // Predicated region
    $region14: #{tpu_custom_call.1} parent=1 // pred_check
      _
    $region15: #{tpu_custom_call.1} parent=1 // pred_check_branch
      %36 = sbr.rel (0) target = $region17
    $region16: #{tpu_custom_call.1} parent=1 // pred_region
      %38 = dma.done [#allocation5], 128
    $region17: #{tpu_custom_call.1} parent=1 // pred_fallthru
      _
    %v39 = vld [vmem:[#allocation2] sm:$0xff]
    %v40 = vmul.f32 %v39, 0.25
    %v41 = vld [vmem:[#allocation4] sm:$0xff]
    %v42 = vmul.f32 %v41, 0.25
    %43 = vmax.xlane.f32.xlu0 %v40
    %v44 = vpop.xlane.xlu0 %43
    %v45 = vsub.f32 %v40, %v44
    %v46 = vmul.f32 %v45, 1.442695
    %v47 = vpow.pop %v46
    %48 = vadd.xlane.f32.xlu0 %v47
    %v49 = vpop.xlane.xlu0 %48
    %v50 = vlog2.pop %v49
    %v51 = vmul.f32 %v50, 0.6931472
    %52 = vmax.xlane.f32.xlu0 %v42
    %v53 = vpop.xlane.xlu0 %52
    %v54 = vsub.f32 %v42, %v53
    %v55 = vmul.f32 %v54, 1.442695
    %v56 = vpow.pop %v55
    %57 = vadd.xlane.f32.xlu0 %v56
    %v58 = vpop.xlane.xlu0 %57
    %v59 = vsub.f32 %v54, %v45
    %v60 = vmul.f32 %v56, %v59
    %61 = vadd.xlane.f32.xlu0 %v60
    %v62 = vpop.xlane.xlu0 %61
    %v63 = vrcp.pop %v58
    %v64 = vmul.f32 %v58, %v63
    %v65 = vsub.f32 1.0, %v64
    %v66 = vmul.f32 %v63, %v65
    %v67 = vadd.f32 %v63, %v66
    %vm68 = vweird.f32 %v58
    %vm69 = vweird.f32 %v63
    %vm70 = vmor %vm68, %vm69
    %v71 = vsel %vm70, %v63, %v67
    %v72 = vand.u32 2147483647, %v58
    %vm73 = vcmp.eq.f32.partialorder %v72, 8.507059e+37
    %v74 = vand.u32 %v58, 2147483648
    %v75 = vor.u32 1.1754944e-38, %v74
    %v76 = vsel %vm73, %v75, %v71
    %v77 = vmul.f32 %v62, %v76
    %v78 = vlog2.pop %v58
    %v79 = vmul.f32 %v78, 0.6931472
    %v80 = vsub.f32 %v77, %v79
    %v81 = vadd.f32 %v80, %v51
    %s82 = smul.u32 0, 8
    %v83 = vlaneseq
    %v84 = vshrl.u32 %v83, 7
    %v85 = vstv %s82
    %v86 = vadd.s32 %v85, %v84
    %vm87 = vcmp.lt.s32.totalorder %v86, 8
    %v88 = vsel %vm87, %v81, 0.0
    %vm89 = vcmask 7168
    %90 = vst.msk [vmem:[%s2] sm:$0xff] %vm89, %v88
    // Predicated region
    $region18: #{tpu_custom_call.1} parent=1 // pred_check
      _
    $region19: #{tpu_custom_call.1} parent=1 // pred_check_branch
      %92 = sbr.rel (0) target = $region21
    $region20: #{tpu_custom_call.1} parent=1 // pred_region
      _
    $region21: #{tpu_custom_call.1} parent=1 // pred_fallthru
      _
    // Predicated region
    $region22: #{tpu_custom_call.1} parent=1 // pred_check
      _
    $region23: #{tpu_custom_call.1} parent=1 // pred_check_branch
      %94 = sbr.rel (0) target = $region25
    $region24: #{tpu_custom_call.1} parent=1 // pred_region
      _
    $region25: #{tpu_custom_call.1} parent=1 // pred_fallthru
      _
    %95 = vsyncpa [#allocation3], 1
    %96 = vsyncpa [#allocation5], 1

</llo_original>
